<compile_context>
chip_gen: v7x
topology: tpu7x:2x2x1
jax: 0.10.0
libtpu: 0.0.40
codegen_flags: <defaults>
</compile_context>

<pallas_src>
import jax
import jax.numpy as jnp
from jax.experimental import pallas as pl
from jax.experimental.pallas import tpu as pltpu

NS = 11         # Hopper-v3 observation dim
NA = 3          # Hopper-v3 action dim
HIDDEN = 256
NW3_PAD = 128   # fc3 weight columns padded to a full 128-lane tile (MXU N=128)
NA_OUT = 8      # narrow output slab written to HBM; wrapper slices [:, :NA]


def _round_up(n, m):
    return (n + m - 1) // m * m


def _actor_kernel(x_ref, w1_ref, b1_ref, w2_ref, b2_ref, w3_ref, b3_ref, o_ref):
    wdt = w1_ref.dtype  # MXU operand dtype (bf16 or f32); accumulation is f32

    # fc1 + ReLU  (K = 11, Mosaic masks the lane padding)
    h1 = jnp.dot(x_ref[...].astype(wdt), w1_ref[...],
                 preferred_element_type=jnp.float32)
    h1 = jnp.maximum(h1 + b1_ref[...], 0.0)

    # fc2 + ReLU
    h2 = jnp.dot(h1.astype(wdt), w2_ref[...],
                 preferred_element_type=jnp.float32)
    h2 = jnp.maximum(h2 + b2_ref[...], 0.0)

    # fc3 + tanh; matmul runs at N=128, but only the first NA_OUT columns
    # (containing the NA real actions) are written back to HBM.
    h3 = jnp.dot(h2.astype(wdt), w3_ref[...],
                 preferred_element_type=jnp.float32)
    o_ref[...] = jnp.tanh(h3[:, :NA_OUT] + b3_ref[...])


def prepare_params(params, weight_dtype=jnp.bfloat16):
    """One-time re-layout of torch-style (out, in) params: transpose to (in, out),
    pad fc3 weight columns to 128 lanes, pad fc3 bias to NA_OUT, reshape biases
    to (1, N).  Do this at init, NOT per forward call."""
    w1, b1, w2, b2, w3, b3 = params
    w1_t = jnp.asarray(w1.T, weight_dtype)                        # (NS, 256)
    w2_t = jnp.asarray(w2.T, weight_dtype)                        # (256, 256)
    w3_p = jnp.zeros((HIDDEN, NW3_PAD), weight_dtype).at[:, :NA].set(
        jnp.asarray(w3.T, weight_dtype))                          # (256, 128)
    b1_r = jnp.asarray(b1, jnp.float32).reshape(1, HIDDEN)
    b2_r = jnp.asarray(b2, jnp.float32).reshape(1, HIDDEN)
    b3_p = jnp.zeros((1, NA_OUT), jnp.float32).at[0, :NA].set(
        jnp.asarray(b3, jnp.float32))                             # (1, 8)
    return (w1_t, b1_r, w2_t, b2_r, w3_p, b3_p)


def _batch_dim_semantics(num_steps):
    """CORE_PARALLEL on dual-TensorCore v7x-class chips (explicit megacore split),
    plain 'parallel' elsewhere."""
    try:
        kind = jax.devices()[0].device_kind.lower().replace(" ", "")
        if ("v7" in kind or "tpu7" in kind) and num_steps >= 2:
            return (pltpu.CORE_PARALLEL,)
    except Exception:
        pass
    return ("parallel",)


def actor_net_forward(x, prepped, *, tile_b=1024):
    """x: (B, NS) float32 -> (B, NA) float32.  prepped = prepare_params(...)."""
    w1_t, b1_r, w2_t, b2_r, w3_p, b3_p = prepped
    B = x.shape[0]
    x = x.astype(jnp.float32)

    # Batch tile selection (no host-side padding of x):
    #  * B <= 16: single block exactly covering the batch (block == full dims).
    #  * B  > 16: cap the tile at ~ceil(B/2) so there are always >= 2 grid
    #    steps (both v7x TCs busy); align to 128 rows for big tiles (v5e MXU
    #    cadence), else 8 (sublane granularity).  The ragged tail block is
    #    handled by Pallas; garbage edge rows are never written back.
    if B <= 16:
        tb = B
    else:
        half = -(-B // 2)
        align = 128 if half >= 128 else 8
        tb = max(8, min(tile_b, _round_up(half, align)))
    num_steps = pl.cdiv(B, tb)

    const = lambda i: (0, 0)  # weights/biases: VMEM-resident across grid steps

    out = pl.pallas_call(
        _actor_kernel,
        out_shape=jax.ShapeDtypeStruct((B, NA_OUT), jnp.float32),
        grid_spec=pltpu.PrefetchScalarGridSpec(
            num_scalar_prefetch=0,
            grid=(num_steps,),
            in_specs=[
                pl.BlockSpec((tb, NS), lambda i: (i, 0)),       # x (unpadded K)
                pl.BlockSpec((NS, HIDDEN), const),              # w1
                pl.BlockSpec((1, HIDDEN), const),               # b1
                pl.BlockSpec((HIDDEN, HIDDEN), const),          # w2
                pl.BlockSpec((1, HIDDEN), const),               # b2
                pl.BlockSpec((HIDDEN, NW3_PAD), const),         # w3 (col-padded)
                pl.BlockSpec((1, NA_OUT), const),               # b3 (narrow)
            ],
            out_specs=pl.BlockSpec((tb, NA_OUT), lambda i: (i, 0)),
        ),
        compiler_params=pltpu.CompilerParams(
            dimension_semantics=_batch_dim_semantics(num_steps)),
    )(x, w1_t, b1_r, w2_t, b2_r, w3_p, b3_p)

    return out[:, :NA]


def init_params(key):
    """Deterministic params matching nn.Linear default init (uniform ±1/sqrt(fan_in))."""
    ks = jax.random.split(key, 6)

    def lin(kw, kb, fan_in, fan_out):
        bound = 1.0 / jnp.sqrt(jnp.float32(fan_in))
        w = jax.random.uniform(kw, (fan_out, fan_in), jnp.float32, -bound, bound)
        b = jax.random.uniform(kb, (fan_out,), jnp.float32, -bound, bound)
        return w, b

    w1, b1 = lin(ks[0], ks[1], NS, HIDDEN)
    w2, b2 = lin(ks[2], ks[3], HIDDEN, HIDDEN)
    w3, b3 = lin(ks[4], ks[5], HIDDEN, NA)
    return (w1, b1, w2, b2, w3, b3)


def reference_forward(x, params):
    w1, b1, w2, b2, w3, b3 = params
    h = jnp.maximum(x @ w1.T + b1, 0.0)
    h = jnp.maximum(h @ w2.T + b2, 0.0)
    return jnp.tanh(h @ w3.T + b3)


if __name__ == "__main__":
    key = jax.random.PRNGKey(0)
    kx, kx2, kx3, kp = jax.random.split(key, 4)

    params = init_params(kp)

    # --- test 1: small batch, f32 weights, exact check ----------------------
    B = 8
    x = jax.random.normal(kx, (B, NS), jnp.float32)
    prepped_f32 = prepare_params(params, weight_dtype=jnp.float32)
    out = jax.block_until_ready(actor_net_forward(x, prepped_f32))
    ref = reference_forward(x, params)
    assert out.shape == (B, NA), out.shape
    assert jnp.allclose(out, ref, atol=1e-5, rtol=1e-5), "f32 mismatch vs reference"

    # --- test 2: small batch, bf16 weights (default fast path) --------------
    prepped_bf16 = prepare_params(params, weight_dtype=jnp.bfloat16)
    out_bf = jax.block_until_ready(actor_net_forward(x, prepped_bf16))
    assert jnp.allclose(out_bf, ref, atol=3e-2, rtol=3e-2), "bf16 mismatch vs reference"

    # --- test 3: multi-step grid + ragged tail block -------------------------
    B2 = 37
    x2 = jax.random.normal(kx2, (B2, NS), jnp.float32)
    out2 = jax.block_until_ready(actor_net_forward(x2, prepped_bf16, tile_b=16))
    ref2 = reference_forward(x2, params)
    assert out2.shape == (B2, NA), out2.shape
    assert jnp.allclose(out2, ref2, atol=3e-2, rtol=3e-2), "tiled mismatch vs reference"

    # --- test 4: tiny non-multiple-of-8 batch (single full-array block) -----
    B3 = 5
    x3 = jax.random.normal(kx3, (B3, NS), jnp.float32)
    out3 = jax.block_until_ready(actor_net_forward(x3, prepped_bf16))
    ref3 = reference_forward(x3, params)
    assert out3.shape == (B3, NA), out3.shape
    assert jnp.allclose(out3, ref3, atol=3e-2, rtol=3e-2), "tiny-batch mismatch vs reference"

    print("KERNEL_OK")
</pallas_src>

<mosaic_0001>
module attributes {stable_mosaic.version = 11 : i64} {
  func.func @_actor_kernel(%arg0: i32, %arg1: memref<8x11xf32, #tpu.memory_space<vmem>>, %arg2: memref<11x256xf32, #tpu.memory_space<vmem>>, %arg3: memref<1x256xf32, #tpu.memory_space<vmem>>, %arg4: memref<256x256xf32, #tpu.memory_space<vmem>>, %arg5: memref<1x256xf32, #tpu.memory_space<vmem>>, %arg6: memref<256x128xf32, #tpu.memory_space<vmem>>, %arg7: memref<1x8xf32, #tpu.memory_space<vmem>>, %arg8: memref<8x8xf32, #tpu.memory_space<vmem>>) attributes {dimension_semantics = [#tpu.dimension_semantics<parallel>], iteration_bounds = array<i64: 1>, scalar_prefetch = 0 : i64, scratch_operands = 0 : i64, tpu.core_type = #tpu.core_type<tc>, window_params = [{transform_indices = @transform_0, window_bounds = array<i64: 8, 11>}, {pipeline_mode = #tpu.pipeline_mode<synchronous>, transform_indices = @transform_1, window_bounds = array<i64: 11, 256>}, {pipeline_mode = #tpu.pipeline_mode<synchronous>, transform_indices = @transform_2, window_bounds = array<i64: 1, 256>}, {pipeline_mode = #tpu.pipeline_mode<synchronous>, transform_indices = @transform_3, window_bounds = array<i64: 256, 256>}, {pipeline_mode = #tpu.pipeline_mode<synchronous>, transform_indices = @transform_4, window_bounds = array<i64: 1, 256>}, {pipeline_mode = #tpu.pipeline_mode<synchronous>, transform_indices = @transform_5, window_bounds = array<i64: 256, 128>}, {pipeline_mode = #tpu.pipeline_mode<synchronous>, transform_indices = @transform_6, window_bounds = array<i64: 1, 8>}, {transform_indices = @transform_7, window_bounds = array<i64: 8, 8>}]} {
    %c0 = arith.constant 0 : index
    %c0_0 = arith.constant 0 : index
    %0 = vector.load %arg1[%c0, %c0_0] : memref<8x11xf32, #tpu.memory_space<vmem>>, vector<8x11xf32>
    %c0_1 = arith.constant 0 : index
    %c0_2 = arith.constant 0 : index
    %1 = vector.load %arg2[%c0_1, %c0_2] : memref<11x256xf32, #tpu.memory_space<vmem>>, vector<11x256xf32>
    %cst = arith.constant dense<0.000000e+00> : vector<8x256xf32>
    %2 = tpu.matmul %0, %1, %cst {dimension_numbers = #tpu.dot_dimension_numbers<[1], [0], [0], [1], [0, 0, 1, 1], [], []>} : vector<8x11xf32>, vector<11x256xf32>, vector<8x256xf32> -> vector<8x256xf32>
    %c0_3 = arith.constant 0 : index
    %c0_4 = arith.constant 0 : index
    %3 = vector.load %arg3[%c0_3, %c0_4] : memref<1x256xf32, #tpu.memory_space<vmem>>, vector<1x256xf32>
    %4 = vector.broadcast %3 : vector<1x256xf32> to vector<8x256xf32>
    %5 = arith.addf %2, %4 : vector<8x256xf32>
    %cst_5 = arith.constant 0.000000e+00 : f32
    %6 = vector.broadcast %cst_5 : f32 to vector<8x256xf32>
    %7 = arith.maximumf %5, %6 : vector<8x256xf32>
    %c0_6 = arith.constant 0 : index
    %c0_7 = arith.constant 0 : index
    %8 = vector.load %arg4[%c0_6, %c0_7] : memref<256x256xf32, #tpu.memory_space<vmem>>, vector<256x256xf32>
    %cst_8 = arith.constant dense<0.000000e+00> : vector<8x256xf32>
    %9 = tpu.matmul %7, %8, %cst_8 {dimension_numbers = #tpu.dot_dimension_numbers<[1], [0], [0], [1], [0, 0, 1, 1], [], []>} : vector<8x256xf32>, vector<256x256xf32>, vector<8x256xf32> -> vector<8x256xf32>
    %c0_9 = arith.constant 0 : index
    %c0_10 = arith.constant 0 : index
    %10 = vector.load %arg5[%c0_9, %c0_10] : memref<1x256xf32, #tpu.memory_space<vmem>>, vector<1x256xf32>
    %11 = vector.broadcast %10 : vector<1x256xf32> to vector<8x256xf32>
    %12 = arith.addf %9, %11 : vector<8x256xf32>
    %cst_11 = arith.constant 0.000000e+00 : f32
    %13 = vector.broadcast %cst_11 : f32 to vector<8x256xf32>
    %14 = arith.maximumf %12, %13 : vector<8x256xf32>
    %c0_12 = arith.constant 0 : index
    %c0_13 = arith.constant 0 : index
    %15 = vector.load %arg6[%c0_12, %c0_13] : memref<256x128xf32, #tpu.memory_space<vmem>>, vector<256x128xf32>
    %cst_14 = arith.constant dense<0.000000e+00> : vector<8x128xf32>
    %16 = tpu.matmul %14, %15, %cst_14 {dimension_numbers = #tpu.dot_dimension_numbers<[1], [0], [0], [1], [0, 0, 1, 1], [], []>} : vector<8x256xf32>, vector<256x128xf32>, vector<8x128xf32> -> vector<8x128xf32>
    %17 = vector.extract_strided_slice %16 {offsets = [0, 0], sizes = [8, 8], strides = [1, 1]} : vector<8x128xf32> to vector<8x8xf32>
    %c0_15 = arith.constant 0 : index
    %c0_16 = arith.constant 0 : index
    %18 = vector.load %arg7[%c0_15, %c0_16] : memref<1x8xf32, #tpu.memory_space<vmem>>, vector<1x8xf32>
    %19 = vector.broadcast %18 : vector<1x8xf32> to vector<8x8xf32>
    %20 = arith.addf %17, %19 : vector<8x8xf32>
    %21 = math.tanh %20 : vector<8x8xf32>
    %c0_17 = arith.constant 0 : index
    %c0_18 = arith.constant 0 : index
    %22 = vector.load %arg8[%c0_17, %c0_18] : memref<8x8xf32, #tpu.memory_space<vmem>>, vector<8x8xf32>
    tpu.vector_store %arg8[%c0_17, %c0_18], %21 {strides = array<i32>} : memref<8x8xf32, #tpu.memory_space<vmem>>, vector<8x8xf32>,
    return
  }
  func.func @transform_0(%arg0: i32) -> (i32, i32) {
    %c0_i32 = arith.constant 0 : i32
    %c0_i32_0 = arith.constant 0 : i32
    return %arg0, %c0_i32 : i32, i32
  }
  func.func @transform_1(%arg0: i32) -> (i32, i32) {
    %c0_i32 = arith.constant 0 : i32
    %c0_i32_0 = arith.constant 0 : i32
    %c0_i32_1 = arith.constant 0 : i32
    return %c0_i32, %c0_i32_0 : i32, i32
  }
  func.func @transform_2(%arg0: i32) -> (i32, i32) {
    %c0_i32 = arith.constant 0 : i32
    %c0_i32_0 = arith.constant 0 : i32
    %c0_i32_1 = arith.constant 0 : i32
    return %c0_i32, %c0_i32_0 : i32, i32
  }
  func.func @transform_3(%arg0: i32) -> (i32, i32) {
    %c0_i32 = arith.constant 0 : i32
    %c0_i32_0 = arith.constant 0 : i32
    %c0_i32_1 = arith.constant 0 : i32
    return %c0_i32, %c0_i32_0 : i32, i32
  }
  func.func @transform_4(%arg0: i32) -> (i32, i32) {
    %c0_i32 = arith.constant 0 : i32
    %c0_i32_0 = arith.constant 0 : i32
    %c0_i32_1 = arith.constant 0 : i32
    return %c0_i32, %c0_i32_0 : i32, i32
  }
  func.func @transform_5(%arg0: i32) -> (i32, i32) {
    %c0_i32 = arith.constant 0 : i32
    %c0_i32_0 = arith.constant 0 : i32
    %c0_i32_1 = arith.constant 0 : i32
    return %c0_i32, %c0_i32_0 : i32, i32
  }
  func.func @transform_6(%arg0: i32) -> (i32, i32) {
    %c0_i32 = arith.constant 0 : i32
    %c0_i32_0 = arith.constant 0 : i32
    %c0_i32_1 = arith.constant 0 : i32
    return %c0_i32, %c0_i32_0 : i32, i32
  }
  func.func @transform_7(%arg0: i32) -> (i32, i32) {
    %c0_i32 = arith.constant 0 : i32
    %c0_i32_0 = arith.constant 0 : i32
    return %arg0, %c0_i32 : i32, i32
  }
}

</mosaic_0001>

<llo_original>
// kernel: tpu_custom_call.1
$region0: #{tpu_custom_call.1}
  #allocation0 [shape = 'u32[]', space=smem, size = 0x4, offset = 0x4, fixed_abs, tag = 'smem constant byte address 0x4 - core index']
  #allocation1 [shape = 'u32[144,128]{1,0:T(1,128)}', space=vmem, size = 0x12000, scoped, tag = 'internal scratch']
  %s0 = inlined_call_operand.hbm [shape: f32[8,11], index: 0, kind: input, shape index: {}]
  %s1 = inlined_call_operand.hbm [shape: f32[11,256], index: 1, kind: input, shape index: {}]
  %s2 = inlined_call_operand.vmem [shape: f32[1,256], index: 2, kind: input, shape index: {}]
  %s3 = inlined_call_operand.hbm [shape: f32[256,256], index: 3, kind: input, shape index: {}]
  %s4 = inlined_call_operand.vmem [shape: f32[1,256], index: 4, kind: input, shape index: {}]
  %s5 = inlined_call_operand.hbm [shape: f32[256,128], index: 5, kind: input, shape index: {}]
  %s6 = inlined_call_operand.vmem [shape: f32[1,8], index: 6, kind: input, shape index: {}]
  %s7 = inlined_call_operand.hbm [shape: f32[8,8], index: 7, kind: output, shape index: {}]
  %s8 = sld [smem:[#allocation0]]
  $region54: #{tpu_custom_call.1} parent=0
    _
  %s10 = ssub.s32 1, %s8
  %s11 = scalar_select 0, %s10, %s8
  $region1: #{tpu_custom_call.1} parent=0
    #allocation2 [shape = 'u8[4096]{0}', space=vmem, size = 0x1000, scoped, tag = 'input window, operand 0, single buffered']
    #allocation3 [shape = 's32[1]{0}', space=sflag, size = 0x4, scoped, tag = 'scoped memory for tpu_custom_call.1']
    #allocation4 [shape = 's32[1]{0}', space=sflag, size = 0x4, scoped, tag = 'scoped memory for tpu_custom_call.1']
    #allocation5 [shape = 'u8[16384]{0}', space=vmem, size = 0x4000, scoped, tag = 'input window, operand 1, single buffered']
    #allocation6 [shape = 's32[1]{0}', space=sflag, size = 0x4, scoped, tag = 'scoped memory for tpu_custom_call.1']
    #allocation7 [shape = 'u8[262144]{0}', space=vmem, size = 0x40000, scoped, tag = 'input window, operand 3, single buffered']
    #allocation8 [shape = 'u8[131072]{0}', space=vmem, size = 0x20000, scoped, tag = 'input window, operand 5, single buffered']
    #allocation9 [shape = 's32[1]{0}', space=sflag, size = 0x4, scoped, tag = 'scoped memory for tpu_custom_call.1']
    #allocation10 [shape = 'u8[4096]{0}', space=vmem, size = 0x1000, scoped, tag = 'output window, operand 0, single buffered']
    %12 = vsyncpa [#allocation3], 0
    %13 = vsyncpa [#allocation6], 0
    %14 = vsyncpa [#allocation9], 0
    %15 = vsyncpa [#allocation4], 0
    // Predicated region
    $region2: #{tpu_custom_call.1} parent=1 // pred_check
      _
    $region3: #{tpu_custom_call.1} parent=1 // pred_check_branch
      %17 = sbr.rel (0) target = $region5
    $region4: #{tpu_custom_call.1} parent=1 // pred_region
      %s19 = ssub.s32 128, 128
      %20 = vsyncadd [#allocation3], %s19
      %s22 = sshll.u32 [#allocation2], 4
      %s23 = int_to_ptr.vmem [resolvable:$true] %s22
      %25 = dma.hbm_to_vmem [thread:$0]  %s0, 128, %s23, [#allocation3]
    $region5: #{tpu_custom_call.1} parent=1 // pred_fallthru
      _
    // Predicated region
    $region6: #{tpu_custom_call.1} parent=1 // pred_check
      _
    $region7: #{tpu_custom_call.1} parent=1 // pred_check_branch
      %27 = sbr.rel (0) target = $region9
    $region8: #{tpu_custom_call.1} parent=1 // pred_region
      %s29 = ssub.s32 512, 512
      %30 = vsyncadd [#allocation6], %s29
      %s31 = sshll.u32 [#allocation5], 4
      %s32 = int_to_ptr.vmem [resolvable:$true] %s31
      %37 = dma.hbm_to_vmem [thread:$0]  %s1, 512, %s32, [#allocation6], 256, 256, 16
    $region9: #{tpu_custom_call.1} parent=1 // pred_fallthru
      _
    // Predicated region
    $region10: #{tpu_custom_call.1} parent=1 // pred_check
      _
    $region11: #{tpu_custom_call.1} parent=1 // pred_check_branch
      %39 = sbr.rel (0) target = $region13
    $region12: #{tpu_custom_call.1} parent=1 // pred_region
      _
    $region13: #{tpu_custom_call.1} parent=1 // pred_fallthru
      _
    // Predicated region
    $region14: #{tpu_custom_call.1} parent=1 // pred_check
      _
    $region15: #{tpu_custom_call.1} parent=1 // pred_check_branch
      %41 = sbr.rel (0) target = $region17
    $region16: #{tpu_custom_call.1} parent=1 // pred_region
      %s43 = ssub.s32 8192, 8192
      %44 = vsyncadd [#allocation6], %s43
      %s45 = sshll.u32 [#allocation7], 4
      %s46 = int_to_ptr.vmem [resolvable:$true] %s45
      %51 = dma.hbm_to_vmem [thread:$0]  %s3, 8192, %s46, [#allocation6], 256, 256, 16
    $region17: #{tpu_custom_call.1} parent=1 // pred_fallthru
      _
    // Predicated region
    $region18: #{tpu_custom_call.1} parent=1 // pred_check
      _
    $region19: #{tpu_custom_call.1} parent=1 // pred_check_branch
      %53 = sbr.rel (0) target = $region21
    $region20: #{tpu_custom_call.1} parent=1 // pred_region
      _
    $region21: #{tpu_custom_call.1} parent=1 // pred_fallthru
      _
    // Predicated region
    $region22: #{tpu_custom_call.1} parent=1 // pred_check
      _
    $region23: #{tpu_custom_call.1} parent=1 // pred_check_branch
      %55 = sbr.rel (0) target = $region25
    $region24: #{tpu_custom_call.1} parent=1 // pred_region
      %s57 = ssub.s32 4096, 4096
      %58 = vsyncadd [#allocation9], %s57
      %s59 = sshll.u32 [#allocation8], 4
      %s60 = int_to_ptr.vmem [resolvable:$true] %s59
      %65 = dma.hbm_to_vmem [thread:$0]  %s5, 4096, %s60, [#allocation9], 128, 128, 8
    $region25: #{tpu_custom_call.1} parent=1 // pred_fallthru
      _
    // Predicated region
    $region26: #{tpu_custom_call.1} parent=1 // pred_check
      _
    $region27: #{tpu_custom_call.1} parent=1 // pred_check_branch
      %67 = sbr.rel (0) target = $region29
    $region28: #{tpu_custom_call.1} parent=1 // pred_region
      _
    $region29: #{tpu_custom_call.1} parent=1 // pred_fallthru
      _
    // Predicated region
    $region30: #{tpu_custom_call.1} parent=1 // pred_check
      _
    $region31: #{tpu_custom_call.1} parent=1 // pred_check_branch
      %69 = sbr.rel (0) target = $region33
    $region32: #{tpu_custom_call.1} parent=1 // pred_region
      %70 = dma.done [#allocation3], 128
    $region33: #{tpu_custom_call.1} parent=1 // pred_fallthru
      _
    // Predicated region
    $region34: #{tpu_custom_call.1} parent=1 // pred_check
      _
    $region35: #{tpu_custom_call.1} parent=1 // pred_check_branch
      %72 = sbr.rel (0) target = $region37
    $region36: #{tpu_custom_call.1} parent=1 // pred_region
      %73 = dma.done [#allocation6], 512
    $region37: #{tpu_custom_call.1} parent=1 // pred_fallthru
      _
    // Predicated region
    $region38: #{tpu_custom_call.1} parent=1 // pred_check
      _
    $region39: #{tpu_custom_call.1} parent=1 // pred_check_branch
      %75 = sbr.rel (0) target = $region41
    $region40: #{tpu_custom_call.1} parent=1 // pred_region
      %76 = dma.done [#allocation6], 8192
    $region41: #{tpu_custom_call.1} parent=1 // pred_fallthru
      _
    // Predicated region
    $region42: #{tpu_custom_call.1} parent=1 // pred_check
      _
    $region43: #{tpu_custom_call.1} parent=1 // pred_check_branch
      %78 = sbr.rel (0) target = $region45
    $region44: #{tpu_custom_call.1} parent=1 // pred_region
      %79 = dma.done [#allocation9], 4096
    $region45: #{tpu_custom_call.1} parent=1 // pred_fallthru
      _
    %v80 = vld [vmem:[#allocation2] sm:$0xff]
    %v81 = vld [vmem:[#allocation5] sm:$0xff]
    %v82 = vld [vmem:[#allocation5 + $0x8] sm:$0xff]
    %v83 = vld [vmem:[#allocation5 + $0x10] sm:$0x7]
    %v84 = vld [vmem:[#allocation5 + $0x18] sm:$0x7]
    %v85 = vld [vmem:[%s2] sm:$0x3]
    %v87 = vlaneseq
    %v88 = vshrl.u32 %v87, 7
    %v89 = vsub.s32 0, %v88
    %v90 = vrot.slane %v85, %v89
    %v91 = vlaneseq
    %v92 = vshrl.u32 %v91, 7
    %v93 = vsub.s32 1, %v92
    %v94 = vrot.slane %v85, %v93
    %vm97 = vcmask 89088
    %v99 = vsel %vm97, %v80, 0
    %vm101 = vcmask 1042432
    %v103 = vsel %vm101, %v83, 0
    %v106 = vsel %vm101, %v84, 0
    %108 = vmatprep.subr.mxu0 %v82
    %109 = vmatpush1.msra.mxu0 %v81
    %110 = vmatprep.subr.mxu0 %v106
    %111 = vmatpush1.msra.mxu0 %v103
    %112 = vmatprep.subr.mxu0 0.0
    %113 = vmatpush1.msra.mxu0 0.0
    %114 = vmatprep.subr.mxu0 0.0
    %115 = vmatpush1.msra.mxu0 0.0
    %116 = vmatprep.subr.mxu0 0.0
    %117 = vmatpush1.msra.mxu0 0.0
    %118 = vmatprep.subr.mxu0 0.0
    %119 = vmatpush1.msra.mxu0 0.0
    %120 = vmatprep.subr.mxu0 0.0
    %121 = vmatpush1.msra.mxu0 0.0
    %122 = vmatprep.subr.mxu0 0.0
    %123 = vmatpush1.msra.mxu0 0.0
    %124 = vmatprep.subr.mxu0 0.0
    %125 = vmatpush1.msra.mxu0 0.0
    %126 = vmatprep.subr.mxu0 0.0
    %127 = vmatpush1.msra.mxu0 0.0
    %128 = vmatprep.subr.mxu0 0.0
    %129 = vmatpush1.msra.mxu0 0.0
    %130 = vmatprep.subr.mxu0 0.0
    %131 = vmatpush1.msra.mxu0 0.0
    %132 = vmatprep.subr.mxu0 0.0
    %133 = vmatpush1.msra.mxu0 0.0
    %134 = vmatprep.subr.mxu0 0.0
    %135 = vmatpush1.msra.mxu0 0.0
    %136 = vmatprep.subr.mxu0 0.0
    %137 = vmatpush1.msra.mxu0 0.0
    %138 = vmatprep.subr.mxu0 0.0
    %139 = vmatpush1.msra.mxu0 0.0
    %140 = vmatprep.subr.mxu0 0.0
    %141 = vmatpush1.msra.mxu0 0.0
    %142 = vmatprep.subr.mxu0 0.0
    %143 = vmatpush1.msra.mxu0 0.0
    %144 = vmatprep.subr.mxu0 0.0
    %145 = vmatpush1.msra.mxu0 0.0
    %146 = vmatprep.subr.mxu0 0.0
    %147 = vmatpush1.msra.mxu0 0.0
    %148 = vmatprep.subr.mxu0 0.0
    %149 = vmatpush1.msra.mxu0 0.0
    %150 = vmatprep.subr.mxu0 0.0
    %151 = vmatpush1.msra.mxu0 0.0
    %152 = vmatprep.subr.mxu0 0.0
    %153 = vmatpush1.msra.mxu0 0.0
    %154 = vmatprep.subr.mxu0 0.0
    %155 = vmatpush1.msra.mxu0 0.0
    %156 = vmatprep.subr.mxu0 0.0
    %157 = vmatpush1.msra.mxu0 0.0
    %158 = vmatprep.subr.mxu0 0.0
    %159 = vmatpush1.msra.mxu0 0.0
    %160 = vmatprep.subr.mxu0 0.0
    %161 = vmatpush1.msra.mxu0 0.0
    %162 = vmatprep.subr.mxu0 0.0
    %163 = vmatpush1.msra.mxu0 0.0
    %164 = vmatprep.subr.mxu0 0.0
    %165 = vmatpush1.msra.mxu0 0.0
    %166 = vmatprep.subr.mxu0 0.0
    %167 = vmatpush1.msra.mxu0 0.0
    %168 = vmatprep.subr.mxu0 0.0
    %169 = vmatpush1.msra.mxu0 0.0
    %170 = vmatprep.subr.mxu0 0.0
    %171 = vmatpush1.msra.mxu0 0.0
    %172 = vmatprep.mubr.f32.mxu0 0.0
    %173 = vmatmul.mubr.f32.gmra.mrb[0].mxu0 %v99
    %v174 = vpop.f32.mrb[0].mxu0
    %v175 = vadd.f32 %v90, %v174
    %v176 = vpop.f32.mrb[0].mxu0
    %v177 = vadd.f32 %v94, %v176
    %178 = vdwg.mxu0
    %v179 = vmax.f32 %v175, 0.0
    %v180 = vmax.f32 %v177, 0.0
    %v181 = vld [vmem:[#allocation7] sm:$0xff]
    %v182 = vld [vmem:[#allocation7 + $0x8] sm:$0xff]
    %v183 = vld [vmem:[#allocation7 + $0x10] sm:$0xff]
    %v184 = vld [vmem:[#allocation7 + $0x18] sm:$0xff]
    %v185 = vld [vmem:[#allocation7 + $0x20] sm:$0xff]
    %v186 = vld [vmem:[#allocation7 + $0x28] sm:$0xff]
    %v187 = vld [vmem:[#allocation7 + $0x30] sm:$0xff]
    %v188 = vld [vmem:[#allocation7 + $0x38] sm:$0xff]
    %v189 = vld [vmem:[#allocation7 + $0x40] sm:$0xff]
    %v190 = vld [vmem:[#allocation7 + $0x48] sm:$0xff]
    %v191 = vld [vmem:[#allocation7 + $0x50] sm:$0xff]
    %v192 = vld [vmem:[#allocation7 + $0x58] sm:$0xff]
    %v193 = vld [vmem:[#allocation7 + $0x60] sm:$0xff]
    %v194 = vld [vmem:[#allocation7 + $0x68] sm:$0xff]
    %v195 = vld [vmem:[#allocation7 + $0x70] sm:$0xff]
    %v196 = vld [vmem:[#allocation7 + $0x78] sm:$0xff]
    %v197 = vld [vmem:[#allocation7 + $0x80] sm:$0xff]
    %v198 = vld [vmem:[#allocation7 + $0x88] sm:$0xff]
    %v199 = vld [vmem:[#allocation7 + $0x90] sm:$0xff]
    %v200 = vld [vmem:[#allocation7 + $0x98] sm:$0xff]
    %v201 = vld [vmem:[#allocation7 + $0xa0] sm:$0xff]
    %v202 = vld [vmem:[#allocation7 + $0xa8] sm:$0xff]
    %v203 = vld [vmem:[#allocation7 + $0xb0] sm:$0xff]
    %v204 = vld [vmem:[#allocation7 + $0xb8] sm:$0xff]
    %v205 = vld [vmem:[#allocation7 + $0xc0] sm:$0xff]
    %v206 = vld [vmem:[#allocation7 + $0xc8] sm:$0xff]
    %v207 = vld [vmem:[#allocation7 + $0xd0] sm:$0xff]
    %v208 = vld [vmem:[#allocation7 + $0xd8] sm:$0xff]
    %v209 = vld [vmem:[#allocation7 + $0xe0] sm:$0xff]
    %v210 = vld [vmem:[#allocation7 + $0xe8] sm:$0xff]
    %v211 = vld [vmem:[#allocation7 + $0xf0] sm:$0xff]
    %v212 = vld [vmem:[#allocation7 + $0xf8] sm:$0xff]
    %v213 = vld [vmem:[#allocation7 + $0x100] sm:$0xff]
    %v214 = vld [vmem:[#allocation7 + $0x108] sm:$0xff]
    %v215 = vld [vmem:[#allocation7 + $0x110] sm:$0xff]
    %v216 = vld [vmem:[#allocation7 + $0x118] sm:$0xff]
    %v217 = vld [vmem:[#allocation7 + $0x120] sm:$0xff]
    %v218 = vld [vmem:[#allocation7 + $0x128] sm:$0xff]
    %v219 = vld [vmem:[#allocation7 + $0x130] sm:$0xff]
    %v220 = vld [vmem:[#allocation7 + $0x138] sm:$0xff]
    %v221 = vld [vmem:[#allocation7 + $0x140] sm:$0xff]
    %v222 = vld [vmem:[#allocation7 + $0x148] sm:$0xff]
    %v223 = vld [vmem:[#allocation7 + $0x150] sm:$0xff]
    %v224 = vld [vmem:[#allocation7 + $0x158] sm:$0xff]
    %v225 = vld [vmem:[#allocation7 + $0x160] sm:$0xff]
    %v226 = vld [vmem:[#allocation7 + $0x168] sm:$0xff]
    %v227 = vld [vmem:[#allocation7 + $0x170] sm:$0xff]
    %v228 = vld [vmem:[#allocation7 + $0x178] sm:$0xff]
    %v229 = vld [vmem:[#allocation7 + $0x180] sm:$0xff]
    %v230 = vld [vmem:[#allocation7 + $0x188] sm:$0xff]
    %v231 = vld [vmem:[#allocation7 + $0x190] sm:$0xff]
    %v232 = vld [vmem:[#allocation7 + $0x198] sm:$0xff]
    %v233 = vld [vmem:[#allocation7 + $0x1a0] sm:$0xff]
    %v234 = vld [vmem:[#allocation7 + $0x1a8] sm:$0xff]
    %v235 = vld [vmem:[#allocation7 + $0x1b0] sm:$0xff]
    %v236 = vld [vmem:[#allocation7 + $0x1b8] sm:$0xff]
    %v237 = vld [vmem:[#allocation7 + $0x1c0] sm:$0xff]
    %v238 = vld [vmem:[#allocation7 + $0x1c8] sm:$0xff]
    %v239 = vld [vmem:[#allocation7 + $0x1d0] sm:$0xff]
    %v240 = vld [vmem:[#allocation7 + $0x1d8] sm:$0xff]
    %v241 = vld [vmem:[#allocation7 + $0x1e0] sm:$0xff]
    %v242 = vld [vmem:[#allocation7 + $0x1e8] sm:$0xff]
    %v243 = vld [vmem:[#allocation7 + $0x1f0] sm:$0xff]
    %v244 = vld [vmem:[#allocation7 + $0x1f8] sm:$0xff]
    %v245 = vld [vmem:[%s4] sm:$0x3]
    %v247 = vlaneseq
    %v248 = vshrl.u32 %v247, 7
    %v249 = vsub.s32 0, %v248
    %v250 = vrot.slane %v245, %v249
    %v251 = vlaneseq
    %v252 = vshrl.u32 %v251, 7
    %v253 = vsub.s32 1, %v252
    %v254 = vrot.slane %v245, %v253
    %257 = vmatprep.subr.mxu0 %v182
    %258 = vmatpush1.msra.mxu0 %v181
    %259 = vmatprep.subr.mxu0 %v184
    %260 = vmatpush1.msra.mxu0 %v183
    %261 = vmatprep.subr.mxu0 %v186
    %262 = vmatpush1.msra.mxu0 %v185
    %263 = vmatprep.subr.mxu0 %v188
    %264 = vmatpush1.msra.mxu0 %v187
    %265 = vmatprep.subr.mxu0 %v190
    %266 = vmatpush1.msra.mxu0 %v189
    %267 = vmatprep.subr.mxu0 %v192
    %268 = vmatpush1.msra.mxu0 %v191
    %269 = vmatprep.subr.mxu0 %v194
    %270 = vmatpush1.msra.mxu0 %v193
    %271 = vmatprep.subr.mxu0 %v196
    %272 = vmatpush1.msra.mxu0 %v195
    %273 = vmatprep.subr.mxu0 %v198
    %274 = vmatpush1.msra.mxu0 %v197
    %275 = vmatprep.subr.mxu0 %v200
    %276 = vmatpush1.msra.mxu0 %v199
    %277 = vmatprep.subr.mxu0 %v202
    %278 = vmatpush1.msra.mxu0 %v201
    %279 = vmatprep.subr.mxu0 %v204
    %280 = vmatpush1.msra.mxu0 %v203
    %281 = vmatprep.subr.mxu0 %v206
    %282 = vmatpush1.msra.mxu0 %v205
    %283 = vmatprep.subr.mxu0 %v208
    %284 = vmatpush1.msra.mxu0 %v207
    %285 = vmatprep.subr.mxu0 %v210
    %286 = vmatpush1.msra.mxu0 %v209
    %287 = vmatprep.subr.mxu0 %v212
    %288 = vmatpush1.msra.mxu0 %v211
    %289 = vmatprep.subr.mxu0 %v214
    %290 = vmatpush1.msra.mxu0 %v213
    %291 = vmatprep.subr.mxu0 %v216
    %292 = vmatpush1.msra.mxu0 %v215
    %293 = vmatprep.subr.mxu0 %v218
    %294 = vmatpush1.msra.mxu0 %v217
    %295 = vmatprep.subr.mxu0 %v220
    %296 = vmatpush1.msra.mxu0 %v219
    %297 = vmatprep.subr.mxu0 %v222
    %298 = vmatpush1.msra.mxu0 %v221
    %299 = vmatprep.subr.mxu0 %v224
    %300 = vmatpush1.msra.mxu0 %v223
    %301 = vmatprep.subr.mxu0 %v226
    %302 = vmatpush1.msra.mxu0 %v225
    %303 = vmatprep.subr.mxu0 %v228
    %304 = vmatpush1.msra.mxu0 %v227
    %305 = vmatprep.subr.mxu0 %v230
    %306 = vmatpush1.msra.mxu0 %v229
    %307 = vmatprep.subr.mxu0 %v232
    %308 = vmatpush1.msra.mxu0 %v231
    %309 = vmatprep.subr.mxu0 %v234
    %310 = vmatpush1.msra.mxu0 %v233
    %311 = vmatprep.subr.mxu0 %v236
    %312 = vmatpush1.msra.mxu0 %v235
    %313 = vmatprep.subr.mxu0 %v238
    %314 = vmatpush1.msra.mxu0 %v237
    %315 = vmatprep.subr.mxu0 %v240
    %316 = vmatpush1.msra.mxu0 %v239
    %317 = vmatprep.subr.mxu0 %v242
    %318 = vmatpush1.msra.mxu0 %v241
    %319 = vmatprep.subr.mxu0 %v244
    %320 = vmatpush1.msra.mxu0 %v243
    %321 = vmatprep.mubr.f32.mxu0 %v180
    %322 = vmatmul.mubr.f32.gmra.mrb[0].mxu0 %v179
    %v323 = vpop.f32.mrb[0].mxu0
    %v324 = vadd.f32 %v250, %v323
    %v325 = vpop.f32.mrb[0].mxu0
    %v326 = vadd.f32 %v254, %v325
    %327 = vdwg.mxu0
    %v328 = vmax.f32 %v324, 0.0
    %v329 = vmax.f32 %v326, 0.0
    %v330 = vld [vmem:[#allocation8] sm:$0xff]
    %v331 = vld [vmem:[#allocation8 + $0x8] sm:$0xff]
    %v332 = vld [vmem:[#allocation8 + $0x10] sm:$0xff]
    %v333 = vld [vmem:[#allocation8 + $0x18] sm:$0xff]
    %v334 = vld [vmem:[#allocation8 + $0x20] sm:$0xff]
    %v335 = vld [vmem:[#allocation8 + $0x28] sm:$0xff]
    %v336 = vld [vmem:[#allocation8 + $0x30] sm:$0xff]
    %v337 = vld [vmem:[#allocation8 + $0x38] sm:$0xff]
    %v338 = vld [vmem:[#allocation8 + $0x40] sm:$0xff]
    %v339 = vld [vmem:[#allocation8 + $0x48] sm:$0xff]
    %v340 = vld [vmem:[#allocation8 + $0x50] sm:$0xff]
    %v341 = vld [vmem:[#allocation8 + $0x58] sm:$0xff]
    %v342 = vld [vmem:[#allocation8 + $0x60] sm:$0xff]
    %v343 = vld [vmem:[#allocation8 + $0x68] sm:$0xff]
    %v344 = vld [vmem:[#allocation8 + $0x70] sm:$0xff]
    %v345 = vld [vmem:[#allocation8 + $0x78] sm:$0xff]
    %v346 = vld [vmem:[#allocation8 + $0x80] sm:$0xff]
    %v347 = vld [vmem:[#allocation8 + $0x88] sm:$0xff]
    %v348 = vld [vmem:[#allocation8 + $0x90] sm:$0xff]
    %v349 = vld [vmem:[#allocation8 + $0x98] sm:$0xff]
    %v350 = vld [vmem:[#allocation8 + $0xa0] sm:$0xff]
    %v351 = vld [vmem:[#allocation8 + $0xa8] sm:$0xff]
    %v352 = vld [vmem:[#allocation8 + $0xb0] sm:$0xff]
    %v353 = vld [vmem:[#allocation8 + $0xb8] sm:$0xff]
    %v354 = vld [vmem:[#allocation8 + $0xc0] sm:$0xff]
    %v355 = vld [vmem:[#allocation8 + $0xc8] sm:$0xff]
    %v356 = vld [vmem:[#allocation8 + $0xd0] sm:$0xff]
    %v357 = vld [vmem:[#allocation8 + $0xd8] sm:$0xff]
    %v358 = vld [vmem:[#allocation8 + $0xe0] sm:$0xff]
    %v359 = vld [vmem:[#allocation8 + $0xe8] sm:$0xff]
    %v360 = vld [vmem:[#allocation8 + $0xf0] sm:$0xff]
    %v361 = vld [vmem:[#allocation8 + $0xf8] sm:$0xff]
    %362 = vmatprep.subr.mxu0 0.0
    %363 = vmatpush1.msra.mxu0 %v330
    %364 = vmatprep.subr.mxu0 0.0
    %365 = vmatpush1.msra.mxu0 %v331
    %366 = vmatprep.subr.mxu0 0.0
    %367 = vmatpush1.msra.mxu0 %v332
    %368 = vmatprep.subr.mxu0 0.0
    %369 = vmatpush1.msra.mxu0 %v333
    %370 = vmatprep.subr.mxu0 0.0
    %371 = vmatpush1.msra.mxu0 %v334
    %372 = vmatprep.subr.mxu0 0.0
    %373 = vmatpush1.msra.mxu0 %v335
    %374 = vmatprep.subr.mxu0 0.0
    %375 = vmatpush1.msra.mxu0 %v336
    %376 = vmatprep.subr.mxu0 0.0
    %377 = vmatpush1.msra.mxu0 %v337
    %378 = vmatprep.subr.mxu0 0.0
    %379 = vmatpush1.msra.mxu0 %v338
    %380 = vmatprep.subr.mxu0 0.0
    %381 = vmatpush1.msra.mxu0 %v339
    %382 = vmatprep.subr.mxu0 0.0
    %383 = vmatpush1.msra.mxu0 %v340
    %384 = vmatprep.subr.mxu0 0.0
    %385 = vmatpush1.msra.mxu0 %v341
    %386 = vmatprep.subr.mxu0 0.0
    %387 = vmatpush1.msra.mxu0 %v342
    %388 = vmatprep.subr.mxu0 0.0
    %389 = vmatpush1.msra.mxu0 %v343
    %390 = vmatprep.subr.mxu0 0.0
    %391 = vmatpush1.msra.mxu0 %v344
    %392 = vmatprep.subr.mxu0 0.0
    %393 = vmatpush1.msra.mxu0 %v345
    %394 = vmatprep.subr.mxu0 0.0
    %395 = vmatpush1.msra.mxu0 %v346
    %396 = vmatprep.subr.mxu0 0.0
    %397 = vmatpush1.msra.mxu0 %v347
    %398 = vmatprep.subr.mxu0 0.0
    %399 = vmatpush1.msra.mxu0 %v348
    %400 = vmatprep.subr.mxu0 0.0
    %401 = vmatpush1.msra.mxu0 %v349
    %402 = vmatprep.subr.mxu0 0.0
    %403 = vmatpush1.msra.mxu0 %v350
    %404 = vmatprep.subr.mxu0 0.0
    %405 = vmatpush1.msra.mxu0 %v351
    %406 = vmatprep.subr.mxu0 0.0
    %407 = vmatpush1.msra.mxu0 %v352
    %408 = vmatprep.subr.mxu0 0.0
    %409 = vmatpush1.msra.mxu0 %v353
    %410 = vmatprep.subr.mxu0 0.0
    %411 = vmatpush1.msra.mxu0 %v354
    %412 = vmatprep.subr.mxu0 0.0
    %413 = vmatpush1.msra.mxu0 %v355
    %414 = vmatprep.subr.mxu0 0.0
    %415 = vmatpush1.msra.mxu0 %v356
    %416 = vmatprep.subr.mxu0 0.0
    %417 = vmatpush1.msra.mxu0 %v357
    %418 = vmatprep.subr.mxu0 0.0
    %419 = vmatpush1.msra.mxu0 %v358
    %420 = vmatprep.subr.mxu0 0.0
    %421 = vmatpush1.msra.mxu0 %v359
    %422 = vmatprep.subr.mxu0 0.0
    %423 = vmatpush1.msra.mxu0 %v360
    %424 = vmatprep.subr.mxu0 0.0
    %425 = vmatpush1.msra.mxu0 %v361
    %426 = vmatprep.mubr.f32.mxu0 %v329
    %427 = vmatmul.mubr.f32.gmra.mrb[0].mxu0 %v328
    %v428 = vpop.f32.mrb[0].mxu0
    %v429 = vadd.f32 0.0, %v428
    %v430 = vpop.f32.mrb[0].mxu0
    %431 = vdwg.mxu0
    %v432 = vld [vmem:[%s6] sm:$0x1]
    %v434 = vlaneseq
    %v435 = vshrl.u32 %v434, 7
    %v436 = vsub.s32 0, %v435
    %v437 = vrot.slane %v432, %v436
    %v439 = vadd.f32 %v429, %v437
    %v440 = vtanh.pop %v439
    %vm441 = vcmask 64512
    %442 = vst.msk [vmem:[#allocation10] sm:$0xff] %vm441, %v440
    // Predicated region
    $region46: #{tpu_custom_call.1} parent=1 // pred_check
      _
    $region47: #{tpu_custom_call.1} parent=1 // pred_check_branch
      %444 = sbr.rel (0) target = $region49
    $region48: #{tpu_custom_call.1} parent=1 // pred_region
      %s446 = ssub.s32 128, 128
      %447 = vsyncadd [#allocation4], %s446
      %s449 = sshll.u32 [#allocation10], 4
      %s450 = int_to_ptr.vmem [resolvable:$true] %s449
      %452 = dma.vmem_to_hbm [thread:$0]  %s450, 128, %s7, [#allocation4]
    $region49: #{tpu_custom_call.1} parent=1 // pred_fallthru
      _
    // Predicated region
    $region50: #{tpu_custom_call.1} parent=1 // pred_check
      _
    $region51: #{tpu_custom_call.1} parent=1 // pred_check_branch
      %454 = sbr.rel (0) target = $region53
    $region52: #{tpu_custom_call.1} parent=1 // pred_region
      %455 = dma.done [#allocation4], 128
    $region53: #{tpu_custom_call.1} parent=1 // pred_fallthru
      _
    %456 = vsyncpa [#allocation3], 1
    %457 = vsyncpa [#allocation6], 1
    %458 = vsyncpa [#allocation9], 1
    %459 = vsyncpa [#allocation4], 1

</llo_original>
